<compile_context>
chip_gen: v7x
topology: tpu7x:2x2x1
jax: 0.10.0
libtpu: 0.0.40
codegen_flags: <defaults>
</compile_context>

<pallas_src>
import functools
import math

import jax
import jax.numpy as jnp
from jax import lax
from jax.experimental import pallas as pl
from jax.experimental.pallas import tpu as pltpu


# ----------------------------------------------------------------------------
# Fused, tiled kernel
# ----------------------------------------------------------------------------
def fused_head_kernel(content_ref, mask_ref, lang_ref,
                      wproj_ref, bproj_ref, wout_ref, bout_ref,
                      out_ref, acc_ref, msum_ref,
                      *, n_chunks, chunk, bf16_vpu):
    s = pl.program_id(1)

    @pl.when(s == 0)
    def _():
        acc_ref[...] = jnp.zeros_like(acc_ref)
        msum_ref[...] = jnp.zeros_like(msum_ref)

    # Per-S-tile masked reduction, processed in sublane-aligned sub-chunks so
    # the (tB, chunk, H) product temporary stays bounded (never a full f32
    # copy of the content tile -> keeps VMEM / vreg pressure low).
    # TODO(synk): for production H >> 128 with small C, commute the output
    # matmul ahead of pooling (content_chunk @ w_out on the MXU) if v7x
    # profiling shows the VALU slot saturated.
    def accum(start):
        c = content_ref[:, pl.ds(start, chunk), :]            # (tB, chunk, H) bf16
        m = mask_ref[:, pl.ds(start, chunk)]                   # (tB, chunk) {0,1}
        if bf16_vpu:
            prod = c * m[:, :, None]                           # bf16 VPU multiply
        else:
            # v5e: VPU has no bf16 -> upcast first; mask is already f32 there.
            prod = c.astype(jnp.float32) * m[:, :, None]
        acc_ref[...] += jnp.sum(prod.astype(jnp.float32), axis=1)          # (tB, H)
        msum_ref[...] += jnp.sum(m.astype(jnp.float32), axis=1, keepdims=True)

    if n_chunks == 1:
        accum(0)
    else:
        def body(ci, carry):
            accum(pl.multiple_of(ci * chunk, chunk))
            return carry
        lax.fori_loop(0, n_chunks, body, 0, unroll=(n_chunks <= 8))

    @pl.when(s == pl.num_programs(1) - 1)
    def _():
        # language projection: Linear(lan_embedding_dim -> projection_dim)
        # TODO(synk): MetaEncoder internals are not in the reference source;
        # stand-in = add projected language embedding under the content mask.
        lang_proj = jnp.dot(lang_ref[...], wproj_ref[...],
                            preferred_element_type=jnp.float32) + bproj_ref[...]
        # sum((content + lang)*mask, 1) == sum(content*mask,1) + lang*sum(mask,1)
        pooled = acc_ref[...] + lang_proj * msum_ref[...]       # (tB, H) f32
        # output_layer: Linear(hidden -> num_classes); bf16 MXU matmul with
        # f32 accumulation, C padded to 128 lanes for an unmasked store.
        out_ref[...] = jnp.dot(pooled.astype(jnp.bfloat16), wout_ref[...],
                               preferred_element_type=jnp.float32) + bout_ref[...]


# ----------------------------------------------------------------------------
# Tile sizing / generation-aware VMEM budgeting
# ----------------------------------------------------------------------------
def _round_up(x, m):
    return ((x + m - 1) // m) * m


def _tpu_generation_info():
    """(vmem_budget_bytes, has_bf16_vpu, two_tensorcores) with safe fallbacks."""
    kind = ""
    try:
        kind = jax.devices()[0].device_kind.lower()
    except Exception:
        pass
    vmem_phys = None
    try:
        vmem_phys = int(pltpu.get_tpu_info().vmem_capacity_bytes)
    except Exception:
        vmem_phys = None
    if vmem_phys is None or vmem_phys <= 0:
        vmem_phys = (64 if "v7" in kind else 128) * 1024 * 1024
    # Leave ~25% headroom for compiler temporaries / internal scratch:
    # v5e/v6e get ~96 MiB of their 128 MiB, v7x stays <= 48 MiB of 64 MiB.
    budget = min(vmem_phys * 3 // 4, 100 * 1024 * 1024)
    has_bf16_vpu = "v5" not in kind      # v5e VPU has no bf16
    two_tc = "v7" in kind                # megacore: keep >= 2 batch tiles
    return budget, has_bf16_vpu, two_tc


def _divisor_tiles(total, candidates):
    out = [c for c in candidates if c <= total and total % c == 0]
    if total not in out:
        out.append(total)                # full extent is always a legal block
    return sorted(set(out), reverse=True)


def _pick_chunk(tB, tS, H):
    """Sub-chunk of tS for the in-kernel masked reduce (bounds temporaries)."""
    limit = 2 * 1024 * 1024
    chunk = tS
    while chunk > 8 and chunk % 2 == 0 and tB * chunk * _round_up(H, 128) * 6 > limit:
        chunk //= 2
    return chunk


def _vmem_bytes(tB, tS, chunk, H, LAN, Cpad, mask_bytes):
    """Estimate of ALL VMEM the pipeline needs for one (tB, tS) tile choice."""
    content = 2 * tB * _round_up(tS, 8) * _round_up(H, 128) * 2       # bf16, x2 buf
    mask = 2 * _round_up(tB, 8) * _round_up(tS, 128) * mask_bytes
    lang = 2 * _round_up(tB, 8) * _round_up(LAN, 128) * 2
    wproj = 2 * _round_up(LAN, 8) * _round_up(H, 128) * 2             # conservative x2
    bproj = 8 * _round_up(H, 128) * 4
    wout = 2 * _round_up(H, 8) * Cpad * 2
    bout = 8 * Cpad * 4
    outbuf = 2 * _round_up(tB, 8) * Cpad * 4
    scratch = _round_up(tB, 8) * _round_up(H, 128) * 4 + _round_up(tB, 8) * 128 * 4
    temps = tB * chunk * _round_up(H, 128) * 6                        # bf16 prod + f32
    return content + mask + lang + wproj + bproj + wout + bout + outbuf + scratch + temps


def _choose_tiles(B, S, H, LAN, Cpad, budget, mask_bytes, split_batch):
    tBs = _divisor_tiles(B, (128, 64, 32, 16, 8))
    if split_batch:
        halved = [c for c in tBs if B // c >= 2]
        if halved:
            tBs = halved                 # keep both v7x TensorCores busy
    tSs = _divisor_tiles(S, (4096, 2048, 1024, 512, 256, 128))
    best = None
    for tB in tBs:
        for tS in tSs:
            chunk = _pick_chunk(tB, tS, H)
            if _vmem_bytes(tB, tS, chunk, H, LAN, Cpad, mask_bytes) > budget:
                continue
            score = (tB * tS, tS)        # biggest tile; prefer longer S-DMAs
            if best is None or score > best[0]:
                best = (score, tB, tS, chunk)
    if best is None:
        tB, tS = min(tBs), min(tSs)      # smallest legal tiles as last resort
        return tB, tS, _pick_chunk(tB, tS, H)
    return best[1], best[2], best[3]


# ----------------------------------------------------------------------------
# pallas_call builder + public wrapper
# ----------------------------------------------------------------------------
def _build_call(B, S, H, LAN, Cpad, tB, tS, chunk, bf16_vpu, budget,
                single_buffer_weights):
    n_chunks = tS // chunk
    grid = (B // tB, S // tS)
    kernel = functools.partial(fused_head_kernel, n_chunks=n_chunks,
                               chunk=chunk, bf16_vpu=bf16_vpu)
    const_kw = ({"pipeline_mode": pl.Buffered(1)} if single_buffer_weights else {})

    mask_bytes = 2 if bf16_vpu else 4
    flops = 2 * B * S * H + 2 * B * LAN * H + 2 * B * H * Cpad
    bytes_accessed = (B * S * H * 2 + B * S * mask_bytes + B * LAN * 2 +
                      LAN * H * 2 + H * Cpad * 2 + H * 4 + Cpad * 4 + B * Cpad * 4)

    return pl.pallas_call(
        kernel,
        out_shape=jax.ShapeDtypeStruct((B, Cpad), jnp.float32),
        grid_spec=pltpu.PrefetchScalarGridSpec(
            num_scalar_prefetch=0,
            grid=grid,
            in_specs=[
                pl.BlockSpec((tB, tS, H), lambda b, s: (b, s, 0)),          # content bf16
                pl.BlockSpec((tB, tS), lambda b, s: (b, s)),                # {0,1} mask
                pl.BlockSpec((tB, LAN), lambda b, s: (b, 0)),               # lang emb bf16
                pl.BlockSpec((LAN, H), lambda b, s: (0, 0), **const_kw),    # w_proj bf16
                pl.BlockSpec((1, H), lambda b, s: (0, 0), **const_kw),      # b_proj f32
                pl.BlockSpec((H, Cpad), lambda b, s: (0, 0), **const_kw),   # w_out bf16
                pl.BlockSpec((1, Cpad), lambda b, s: (0, 0), **const_kw),   # b_out f32
            ],
            out_specs=pl.BlockSpec((tB, Cpad), lambda b, s: (b, 0)),
            scratch_shapes=[pltpu.VMEM((tB, H), jnp.float32),    # sum(content*mask)
                            pltpu.VMEM((tB, 1), jnp.float32)],   # sum(mask)
        ),
        compiler_params=pltpu.CompilerParams(
            dimension_semantics=("parallel", "arbitrary"),
            vmem_limit_bytes=budget,
        ),
        cost_estimate=pl.CostEstimate(flops=flops, transcendentals=0,
                                      bytes_accessed=bytes_accessed),
    )


def meta_model_completion_forward(content_emb, content_mask, lang_emb,
                                  w_proj, b_proj, w_out, b_out):
    """content_emb: [B,S,H], content_mask: [B,S] (any numeric, >0 == valid),
       lang_emb: [B,LAN], w_proj: [LAN,H], b_proj: [H],
       w_out: [H,C], b_out: [C]  ->  [B,C] f32"""
    B, S, H = content_emb.shape
    LAN = lang_emb.shape[-1]
    C = w_out.shape[1]
    Cpad = max(128, pl.cdiv(C, 128) * 128)     # lane-dense output store

    budget, bf16_vpu, two_tc = _tpu_generation_info()
    mask_dtype = jnp.bfloat16 if bf16_vpu else jnp.float32
    mask_bytes = 2 if bf16_vpu else 4

    # bf16 on every HBM->VMEM data path (content, mask, lang, weights); all
    # accumulation stays f32.  The {0,1} mask is precomputed on the host so
    # the kernel never does a compare / int->float convert per element.
    content_bf16 = content_emb.astype(jnp.bfloat16)
    mask_arr = (content_mask > 0).astype(mask_dtype)
    lang_b = lang_emb.astype(jnp.bfloat16)
    w_proj_b = w_proj.astype(jnp.bfloat16)
    b_proj2 = b_proj.reshape(1, H).astype(jnp.float32)
    w_out_pad = jnp.zeros((H, Cpad), jnp.bfloat16).at[:, :C].set(
        w_out.astype(jnp.bfloat16))
    b_out_pad = jnp.zeros((1, Cpad), jnp.float32).at[:, :C].set(
        b_out.astype(jnp.float32))

    tB, tS, chunk = _choose_tiles(B, S, H, LAN, Cpad, budget, mask_bytes,
                                  split_batch=two_tc)

    args = (content_bf16, mask_arr, lang_b, w_proj_b, b_proj2, w_out_pad, b_out_pad)
    try:
        # constant-index weights single-buffered -> reclaims VMEM for content
        out_pad = _build_call(B, S, H, LAN, Cpad, tB, tS, chunk, bf16_vpu,
                              budget, single_buffer_weights=True)(*args)
    except Exception:
        # fallback if pipeline_mode=pl.Buffered(1) is rejected by this Pallas
        out_pad = _build_call(B, S, H, LAN, Cpad, tB, tS, chunk, bf16_vpu,
                              budget, single_buffer_weights=False)(*args)

    return out_pad[:, :C]


# ----------------------------------------------------------------------------
# Parameter construction + glue (embedding gathers) in plain JAX
# ----------------------------------------------------------------------------
def make_params(key, s_vocab, hidden, lan_dim, proj_dim, num_classes):
    ks = jax.random.split(key, 6)
    # LeftEmbedding: token embedding table (internals not provided -> gather)
    tok_emb = jax.random.normal(ks[0], (s_vocab, hidden), jnp.float32) * 0.02

    # language_embedding_layer: Tensor(4, lan_dim) with xavier_normal_
    xav_std = math.sqrt(2.0 / (4 + lan_dim))
    lang_table = jax.random.normal(ks[1], (4, lan_dim), jnp.float32) * xav_std

    # language_embedding_projection: Linear(lan_dim, proj_dim)
    lim_p = 1.0 / math.sqrt(lan_dim)
    w_proj = jax.random.uniform(ks[2], (lan_dim, proj_dim), jnp.float32, -lim_p, lim_p)
    b_proj = jax.random.uniform(ks[3], (proj_dim,), jnp.float32, -lim_p, lim_p)

    # output_layer: Linear(hidden, num_classes)
    lim_o = 1.0 / math.sqrt(hidden)
    w_out = jax.random.uniform(ks[4], (hidden, num_classes), jnp.float32, -lim_o, lim_o)
    b_out = jax.random.uniform(ks[5], (num_classes,), jnp.float32, -lim_o, lim_o)

    return dict(tok_emb=tok_emb, lang_table=lang_table,
                w_proj=w_proj, b_proj=b_proj, w_out=w_out, b_out=b_out)


if __name__ == "__main__":
    B, S = 2, 8
    HIDDEN = 32
    LAN_DIM = 16
    PROJ_DIM = HIDDEN          # projected language embedding added to hidden states
    NUM_CLASSES = 8
    S_VOCAB = 50

    key = jax.random.PRNGKey(0)
    pkey, dkey = jax.random.split(key)
    params = make_params(pkey, S_VOCAB, HIDDEN, LAN_DIM, PROJ_DIM, NUM_CLASSES)

    dks = jax.random.split(dkey, 3)
    content = jax.random.randint(dks[0], (B, S), 0, S_VOCAB)          # token ids
    content_mask = (jax.random.uniform(dks[1], (B, S)) > 0.2).astype(jnp.int32)
    language = jax.random.randint(dks[2], (B,), 0, 4)                 # language ids

    # Glue: embedding gathers (LeftEmbedding stand-in + language table lookup)
    # TODO(synk): LeftEmbedding's `named` handling is not defined in the
    # reference source; token-embedding gather only.
    content_emb = jnp.take(params["tok_emb"], content, axis=0)        # [B,S,H]
    lang_emb = jnp.take(params["lang_table"], language, axis=0)       # [B,LAN]

    out = meta_model_completion_forward(
        content_emb, content_mask, lang_emb,
        params["w_proj"], params["b_proj"],
        params["w_out"], params["b_out"])
    out = jax.block_until_ready(out)

    # quick correctness check against a pure-JAX f32 reference of the same math
    lang_proj_ref = lang_emb @ params["w_proj"] + params["b_proj"]
    mask_f = (content_mask > 0).astype(jnp.float32)[:, :, None]
    mem_ref = (content_emb + lang_proj_ref[:, None, :]) * mask_f
    ref = jnp.sum(mem_ref, axis=1) @ params["w_out"] + params["b_out"]
    assert out.shape == (B, NUM_CLASSES) and out.dtype == jnp.float32
    assert jnp.allclose(out, ref, atol=2e-2, rtol=2e-2)
    print("KERNEL_OK")
</pallas_src>

<mosaic_0001>
module attributes {stable_mosaic.version = 11 : i64} {
  func.func @fused_head_kernel(%arg0: i32, %arg1: i32, %arg2: memref<2x8x32xbf16, #tpu.memory_space<vmem>>, %arg3: memref<2x8xbf16, #tpu.memory_space<vmem>>, %arg4: memref<2x16xbf16, #tpu.memory_space<vmem>>, %arg5: memref<16x32xbf16, #tpu.memory_space<vmem>>, %arg6: memref<1x32xf32, #tpu.memory_space<vmem>>, %arg7: memref<32x128xbf16, #tpu.memory_space<vmem>>, %arg8: memref<1x128xf32, #tpu.memory_space<vmem>>, %arg9: memref<2x128xf32, #tpu.memory_space<vmem>>, %arg10: memref<2x32xf32, #tpu.memory_space<vmem>>, %arg11: memref<2x1xf32, #tpu.memory_space<vmem>>) attributes {dimension_semantics = [#tpu.dimension_semantics<parallel>, #tpu.dimension_semantics<arbitrary>], iteration_bounds = array<i64: 1, 1>, scalar_prefetch = 0 : i64, scratch_operands = 2 : i64, tpu.core_type = #tpu.core_type<tc>, window_params = [{transform_indices = @transform_0, window_bounds = array<i64: 2, 8, 32>}, {transform_indices = @transform_1, window_bounds = array<i64: 2, 8>}, {transform_indices = @transform_2, window_bounds = array<i64: 2, 16>}, {pipeline_mode = #tpu.pipeline_mode<synchronous>, transform_indices = @transform_3, window_bounds = array<i64: 16, 32>}, {pipeline_mode = #tpu.pipeline_mode<synchronous>, transform_indices = @transform_4, window_bounds = array<i64: 1, 32>}, {pipeline_mode = #tpu.pipeline_mode<synchronous>, transform_indices = @transform_5, window_bounds = array<i64: 32, 128>}, {pipeline_mode = #tpu.pipeline_mode<synchronous>, transform_indices = @transform_6, window_bounds = array<i64: 1, 128>}, {transform_indices = @transform_7, window_bounds = array<i64: 2, 128>}]} {
    %c0_i32 = arith.constant 0 : i32
    %0 = arith.cmpi eq, %arg1, %c0_i32 : i32
    %1 = arith.extui %0 : i1 to i32
    %c0_i32_0 = arith.constant 0 : i32
    %2 = arith.cmpi ne, %1, %c0_i32_0 : i32
    scf.if %2 {
      %cst_16 = arith.constant 0.000000e+00 : f32
      %22 = vector.broadcast %cst_16 : f32 to vector<2x32xf32>
      %c0_17 = arith.constant 0 : index
      %c0_18 = arith.constant 0 : index
      %23 = vector.load %arg10[%c0_17, %c0_18] : memref<2x32xf32, #tpu.memory_space<vmem>>, vector<2x32xf32>
      tpu.vector_store %arg10[%c0_17, %c0_18], %22 {strides = array<i32>} : memref<2x32xf32, #tpu.memory_space<vmem>>, vector<2x32xf32>,
      %cst_19 = arith.constant 0.000000e+00 : f32
      %24 = vector.broadcast %cst_19 : f32 to vector<2x1xf32>
      %c0_20 = arith.constant 0 : index
      %c0_21 = arith.constant 0 : index
      %25 = vector.load %arg11[%c0_20, %c0_21] : memref<2x1xf32, #tpu.memory_space<vmem>>, vector<2x1xf32>
      tpu.vector_store %arg11[%c0_20, %c0_21], %24 {strides = array<i32>} : memref<2x1xf32, #tpu.memory_space<vmem>>, vector<2x1xf32>,
    } else {
    }
    %c0 = arith.constant 0 : index
    %c0_1 = arith.constant 0 : index
    %c0_2 = arith.constant 0 : index
    %3 = vector.load %arg2[%c0, %c0_1, %c0_2] : memref<2x8x32xbf16, #tpu.memory_space<vmem>>, vector<2x8x32xbf16>
    %c0_3 = arith.constant 0 : index
    %c0_4 = arith.constant 0 : index
    %4 = vector.load %arg3[%c0_3, %c0_4] : memref<2x8xbf16, #tpu.memory_space<vmem>>, vector<2x8xbf16>
    %5 = vector.shape_cast %4 : vector<2x8xbf16> to vector<2x8x1xbf16>
    %6 = vector.broadcast %5 : vector<2x8x1xbf16> to vector<2x8x32xbf16>
    %7 = arith.mulf %3, %6 : vector<2x8x32xbf16>
    %c0_5 = arith.constant 0 : index
    %c0_6 = arith.constant 0 : index
    %8 = vector.load %arg10[%c0_5, %c0_6] : memref<2x32xf32, #tpu.memory_space<vmem>>, vector<2x32xf32>
    %9 = arith.extf %7 : vector<2x8x32xbf16> to vector<2x8x32xf32>
    %cst = arith.constant dense<0.000000e+00> : vector<2x32xf32>
    %10 = vector.multi_reduction <add>, %9, %cst [1] : vector<2x8x32xf32> to vector<2x32xf32>
    %11 = arith.addf %8, %10 : vector<2x32xf32>
    %c0_7 = arith.constant 0 : index
    %c0_8 = arith.constant 0 : index
    %12 = vector.load %arg10[%c0_7, %c0_8] : memref<2x32xf32, #tpu.memory_space<vmem>>, vector<2x32xf32>
    tpu.vector_store %arg10[%c0_7, %c0_8], %11 {strides = array<i32>} : memref<2x32xf32, #tpu.memory_space<vmem>>, vector<2x32xf32>,
    %c0_9 = arith.constant 0 : index
    %c0_10 = arith.constant 0 : index
    %13 = vector.load %arg11[%c0_9, %c0_10] : memref<2x1xf32, #tpu.memory_space<vmem>>, vector<2x1xf32>
    %14 = arith.extf %4 : vector<2x8xbf16> to vector<2x8xf32>
    %cst_11 = arith.constant dense<0.000000e+00> : vector<2xf32>
    %15 = vector.multi_reduction <add>, %14, %cst_11 [1] : vector<2x8xf32> to vector<2xf32>
    %16 = vector.shape_cast %15 : vector<2xf32> to vector<2x1xf32>
    %17 = arith.addf %13, %16 : vector<2x1xf32>
    %c0_12 = arith.constant 0 : index
    %c0_13 = arith.constant 0 : index
    %18 = vector.load %arg11[%c0_12, %c0_13] : memref<2x1xf32, #tpu.memory_space<vmem>>, vector<2x1xf32>
    tpu.vector_store %arg11[%c0_12, %c0_13], %17 {strides = array<i32>} : memref<2x1xf32, #tpu.memory_space<vmem>>, vector<2x1xf32>,
    %c0_i32_14 = arith.constant 0 : i32
    %19 = arith.cmpi eq, %arg1, %c0_i32_14 : i32
    %20 = arith.extui %19 : i1 to i32
    %c0_i32_15 = arith.constant 0 : i32
    %21 = arith.cmpi ne, %20, %c0_i32_15 : i32
    scf.if %21 {
      %c0_16 = arith.constant 0 : index
      %c0_17 = arith.constant 0 : index
      %22 = vector.load %arg4[%c0_16, %c0_17] : memref<2x16xbf16, #tpu.memory_space<vmem>>, vector<2x16xbf16>
      %c0_18 = arith.constant 0 : index
      %c0_19 = arith.constant 0 : index
      %23 = vector.load %arg5[%c0_18, %c0_19] : memref<16x32xbf16, #tpu.memory_space<vmem>>, vector<16x32xbf16>
      %cst_20 = arith.constant dense<0.000000e+00> : vector<2x32xf32>
      %24 = tpu.matmul %22, %23, %cst_20 {dimension_numbers = #tpu.dot_dimension_numbers<[1], [0], [0], [1], [0, 0, 1, 1], [], []>} : vector<2x16xbf16>, vector<16x32xbf16>, vector<2x32xf32> -> vector<2x32xf32>
      %c0_21 = arith.constant 0 : index
      %c0_22 = arith.constant 0 : index
      %25 = vector.load %arg6[%c0_21, %c0_22] : memref<1x32xf32, #tpu.memory_space<vmem>>, vector<1x32xf32>
      %26 = vector.broadcast %25 : vector<1x32xf32> to vector<2x32xf32>
      %27 = arith.addf %24, %26 : vector<2x32xf32>
      %c0_23 = arith.constant 0 : index
      %c0_24 = arith.constant 0 : index
      %28 = vector.load %arg10[%c0_23, %c0_24] : memref<2x32xf32, #tpu.memory_space<vmem>>, vector<2x32xf32>
      %c0_25 = arith.constant 0 : index
      %c0_26 = arith.constant 0 : index
      %29 = vector.load %arg11[%c0_25, %c0_26] : memref<2x1xf32, #tpu.memory_space<vmem>>, vector<2x1xf32>
      %30 = vector.broadcast %29 : vector<2x1xf32> to vector<2x32xf32>
      %31 = arith.mulf %27, %30 : vector<2x32xf32>
      %32 = arith.addf %28, %31 : vector<2x32xf32>
      %33 = arith.truncf %32 : vector<2x32xf32> to vector<2x32xbf16>
      %c0_27 = arith.constant 0 : index
      %c0_28 = arith.constant 0 : index
      %34 = vector.load %arg7[%c0_27, %c0_28] : memref<32x128xbf16, #tpu.memory_space<vmem>>, vector<32x128xbf16>
      %cst_29 = arith.constant dense<0.000000e+00> : vector<2x128xf32>
      %35 = tpu.matmul %33, %34, %cst_29 {dimension_numbers = #tpu.dot_dimension_numbers<[1], [0], [0], [1], [0, 0, 1, 1], [], []>} : vector<2x32xbf16>, vector<32x128xbf16>, vector<2x128xf32> -> vector<2x128xf32>
      %c0_30 = arith.constant 0 : index
      %c0_31 = arith.constant 0 : index
      %36 = vector.load %arg8[%c0_30, %c0_31] : memref<1x128xf32, #tpu.memory_space<vmem>>, vector<1x128xf32>
      %37 = vector.broadcast %36 : vector<1x128xf32> to vector<2x128xf32>
      %38 = arith.addf %35, %37 : vector<2x128xf32>
      %c0_32 = arith.constant 0 : index
      %c0_33 = arith.constant 0 : index
      %39 = vector.load %arg9[%c0_32, %c0_33] : memref<2x128xf32, #tpu.memory_space<vmem>>, vector<2x128xf32>
      tpu.vector_store %arg9[%c0_32, %c0_33], %38 {strides = array<i32>} : memref<2x128xf32, #tpu.memory_space<vmem>>, vector<2x128xf32>,
    } else {
    }
    return
  }
  func.func @transform_0(%arg0: i32, %arg1: i32) -> (i32, i32, i32) {
    %c0_i32 = arith.constant 0 : i32
    %c0_i32_0 = arith.constant 0 : i32
    return %arg0, %arg1, %c0_i32 : i32, i32, i32
  }
  func.func @transform_1(%arg0: i32, %arg1: i32) -> (i32, i32) {
    %c0_i32 = arith.constant 0 : i32
    return %arg0, %arg1 : i32, i32
  }
  func.func @transform_2(%arg0: i32, %arg1: i32) -> (i32, i32) {
    %c0_i32 = arith.constant 0 : i32
    %c0_i32_0 = arith.constant 0 : i32
    return %arg0, %c0_i32 : i32, i32
  }
  func.func @transform_3(%arg0: i32, %arg1: i32) -> (i32, i32) {
    %c0_i32 = arith.constant 0 : i32
    %c0_i32_0 = arith.constant 0 : i32
    %c0_i32_1 = arith.constant 0 : i32
    return %c0_i32, %c0_i32_0 : i32, i32
  }
  func.func @transform_4(%arg0: i32, %arg1: i32) -> (i32, i32) {
    %c0_i32 = arith.constant 0 : i32
    %c0_i32_0 = arith.constant 0 : i32
    %c0_i32_1 = arith.constant 0 : i32
    return %c0_i32, %c0_i32_0 : i32, i32
  }
  func.func @transform_5(%arg0: i32, %arg1: i32) -> (i32, i32) {
    %c0_i32 = arith.constant 0 : i32
    %c0_i32_0 = arith.constant 0 : i32
    %c0_i32_1 = arith.constant 0 : i32
    return %c0_i32, %c0_i32_0 : i32, i32
  }
  func.func @transform_6(%arg0: i32, %arg1: i32) -> (i32, i32) {
    %c0_i32 = arith.constant 0 : i32
    %c0_i32_0 = arith.constant 0 : i32
    %c0_i32_1 = arith.constant 0 : i32
    return %c0_i32, %c0_i32_0 : i32, i32
  }
  func.func @transform_7(%arg0: i32, %arg1: i32) -> (i32, i32) {
    %c0_i32 = arith.constant 0 : i32
    %c0_i32_0 = arith.constant 0 : i32
    return %arg0, %c0_i32 : i32, i32
  }
}

module attributes {stable_mosaic.version = 11 : i64} {
  func.func @fused_head_kernel(%arg0: i32, %arg1: i32, %arg2: memref<2x8x32xbf16, #tpu.memory_space<vmem>>, %arg3: memref<2x8xbf16, #tpu.memory_space<vmem>>, %arg4: memref<2x16xbf16, #tpu.memory_space<vmem>>, %arg5: memref<16x32xbf16, #tpu.memory_space<vmem>>, %arg6: memref<1x32xf32, #tpu.memory_space<vmem>>, %arg7: memref<32x128xbf16, #tpu.memory_space<vmem>>, %arg8: memref<1x128xf32, #tpu.memory_space<vmem>>, %arg9: memref<2x128xf32, #tpu.memory_space<vmem>>, %arg10: memref<2x32xf32, #tpu.memory_space<vmem>>, %arg11: memref<2x1xf32, #tpu.memory_space<vmem>>) attributes {dimension_semantics = [#tpu.dimension_semantics<parallel>, #tpu.dimension_semantics<arbitrary>], iteration_bounds = array<i64: 1, 1>, scalar_prefetch = 0 : i64, scratch_operands = 2 : i64, tpu.core_type = #tpu.core_type<tc>, window_params = [{transform_indices = @transform_0, window_bounds = array<i64: 2, 8, 32>}, {transform_indices = @transform_1, window_bounds = array<i64: 2, 8>}, {transform_indices = @transform_2, window_bounds = array<i64: 2, 16>}, {pipeline_mode = #tpu.pipeline_mode<synchronous>, transform_indices = @transform_3, window_bounds = array<i64: 16, 32>}, {pipeline_mode = #tpu.pipeline_mode<synchronous>, transform_indices = @transform_4, window_bounds = array<i64: 1, 32>}, {pipeline_mode = #tpu.pipeline_mode<synchronous>, transform_indices = @transform_5, window_bounds = array<i64: 32, 128>}, {pipeline_mode = #tpu.pipeline_mode<synchronous>, transform_indices = @transform_6, window_bounds = array<i64: 1, 128>}, {transform_indices = @transform_7, window_bounds = array<i64: 2, 128>}]} {
    %c0_i32 = arith.constant 0 : i32
    %0 = arith.cmpi eq, %arg1, %c0_i32 : i32
    %1 = arith.extui %0 : i1 to i32
    %c0_i32_0 = arith.constant 0 : i32
    %2 = arith.cmpi ne, %1, %c0_i32_0 : i32
    scf.if %2 {
      %cst_16 = arith.constant 0.000000e+00 : f32
      %22 = vector.broadcast %cst_16 : f32 to vector<2x32xf32>
      %c0_17 = arith.constant 0 : index
      %c0_18 = arith.constant 0 : index
      %23 = vector.load %arg10[%c0_17, %c0_18] : memref<2x32xf32, #tpu.memory_space<vmem>>, vector<2x32xf32>
      tpu.vector_store %arg10[%c0_17, %c0_18], %22 {strides = array<i32>} : memref<2x32xf32, #tpu.memory_space<vmem>>, vector<2x32xf32>,
      %cst_19 = arith.constant 0.000000e+00 : f32
      %24 = vector.broadcast %cst_19 : f32 to vector<2x1xf32>
      %c0_20 = arith.constant 0 : index
      %c0_21 = arith.constant 0 : index
      %25 = vector.load %arg11[%c0_20, %c0_21] : memref<2x1xf32, #tpu.memory_space<vmem>>, vector<2x1xf32>
      tpu.vector_store %arg11[%c0_20, %c0_21], %24 {strides = array<i32>} : memref<2x1xf32, #tpu.memory_space<vmem>>, vector<2x1xf32>,
    } else {
    }
    %c0 = arith.constant 0 : index
    %c0_1 = arith.constant 0 : index
    %c0_2 = arith.constant 0 : index
    %3 = vector.load %arg2[%c0, %c0_1, %c0_2] : memref<2x8x32xbf16, #tpu.memory_space<vmem>>, vector<2x8x32xbf16>
    %c0_3 = arith.constant 0 : index
    %c0_4 = arith.constant 0 : index
    %4 = vector.load %arg3[%c0_3, %c0_4] : memref<2x8xbf16, #tpu.memory_space<vmem>>, vector<2x8xbf16>
    %5 = vector.shape_cast %4 : vector<2x8xbf16> to vector<2x8x1xbf16>
    %6 = vector.broadcast %5 : vector<2x8x1xbf16> to vector<2x8x32xbf16>
    %7 = arith.mulf %3, %6 : vector<2x8x32xbf16>
    %c0_5 = arith.constant 0 : index
    %c0_6 = arith.constant 0 : index
    %8 = vector.load %arg10[%c0_5, %c0_6] : memref<2x32xf32, #tpu.memory_space<vmem>>, vector<2x32xf32>
    %9 = arith.extf %7 : vector<2x8x32xbf16> to vector<2x8x32xf32>
    %cst = arith.constant dense<0.000000e+00> : vector<2x32xf32>
    %10 = vector.multi_reduction <add>, %9, %cst [1] : vector<2x8x32xf32> to vector<2x32xf32>
    %11 = arith.addf %8, %10 : vector<2x32xf32>
    %c0_7 = arith.constant 0 : index
    %c0_8 = arith.constant 0 : index
    %12 = vector.load %arg10[%c0_7, %c0_8] : memref<2x32xf32, #tpu.memory_space<vmem>>, vector<2x32xf32>
    tpu.vector_store %arg10[%c0_7, %c0_8], %11 {strides = array<i32>} : memref<2x32xf32, #tpu.memory_space<vmem>>, vector<2x32xf32>,
    %c0_9 = arith.constant 0 : index
    %c0_10 = arith.constant 0 : index
    %13 = vector.load %arg11[%c0_9, %c0_10] : memref<2x1xf32, #tpu.memory_space<vmem>>, vector<2x1xf32>
    %14 = arith.extf %4 : vector<2x8xbf16> to vector<2x8xf32>
    %cst_11 = arith.constant dense<0.000000e+00> : vector<2xf32>
    %15 = vector.multi_reduction <add>, %14, %cst_11 [1] : vector<2x8xf32> to vector<2xf32>
    %16 = vector.shape_cast %15 : vector<2xf32> to vector<2x1xf32>
    %17 = arith.addf %13, %16 : vector<2x1xf32>
    %c0_12 = arith.constant 0 : index
    %c0_13 = arith.constant 0 : index
    %18 = vector.load %arg11[%c0_12, %c0_13] : memref<2x1xf32, #tpu.memory_space<vmem>>, vector<2x1xf32>
    tpu.vector_store %arg11[%c0_12, %c0_13], %17 {strides = array<i32>} : memref<2x1xf32, #tpu.memory_space<vmem>>, vector<2x1xf32>,
    %c0_i32_14 = arith.constant 0 : i32
    %19 = arith.cmpi eq, %arg1, %c0_i32_14 : i32
    %20 = arith.extui %19 : i1 to i32
    %c0_i32_15 = arith.constant 0 : i32
    %21 = arith.cmpi ne, %20, %c0_i32_15 : i32
    scf.if %21 {
      %c0_16 = arith.constant 0 : index
      %c0_17 = arith.constant 0 : index
      %22 = vector.load %arg4[%c0_16, %c0_17] : memref<2x16xbf16, #tpu.memory_space<vmem>>, vector<2x16xbf16>
      %c0_18 = arith.constant 0 : index
      %c0_19 = arith.constant 0 : index
      %23 = vector.load %arg5[%c0_18, %c0_19] : memref<16x32xbf16, #tpu.memory_space<vmem>>, vector<16x32xbf16>
      %cst_20 = arith.constant dense<0.000000e+00> : vector<2x32xf32>
      %24 = tpu.matmul %22, %23, %cst_20 {dimension_numbers = #tpu.dot_dimension_numbers<[1], [0], [0], [1], [0, 0, 1, 1], [], []>} : vector<2x16xbf16>, vector<16x32xbf16>, vector<2x32xf32> -> vector<2x32xf32>
      %c0_21 = arith.constant 0 : index
      %c0_22 = arith.constant 0 : index
      %25 = vector.load %arg6[%c0_21, %c0_22] : memref<1x32xf32, #tpu.memory_space<vmem>>, vector<1x32xf32>
      %26 = vector.broadcast %25 : vector<1x32xf32> to vector<2x32xf32>
      %27 = arith.addf %24, %26 : vector<2x32xf32>
      %c0_23 = arith.constant 0 : index
      %c0_24 = arith.constant 0 : index
      %28 = vector.load %arg10[%c0_23, %c0_24] : memref<2x32xf32, #tpu.memory_space<vmem>>, vector<2x32xf32>
      %c0_25 = arith.constant 0 : index
      %c0_26 = arith.constant 0 : index
      %29 = vector.load %arg11[%c0_25, %c0_26] : memref<2x1xf32, #tpu.memory_space<vmem>>, vector<2x1xf32>
      %30 = vector.broadcast %29 : vector<2x1xf32> to vector<2x32xf32>
      %31 = arith.mulf %27, %30 : vector<2x32xf32>
      %32 = arith.addf %28, %31 : vector<2x32xf32>
      %33 = arith.truncf %32 : vector<2x32xf32> to vector<2x32xbf16>
      %c0_27 = arith.constant 0 : index
      %c0_28 = arith.constant 0 : index
      %34 = vector.load %arg7[%c0_27, %c0_28] : memref<32x128xbf16, #tpu.memory_space<vmem>>, vector<32x128xbf16>
      %cst_29 = arith.constant dense<0.000000e+00> : vector<2x128xf32>
      %35 = tpu.matmul %33, %34, %cst_29 {dimension_numbers = #tpu.dot_dimension_numbers<[1], [0], [0], [1], [0, 0, 1, 1], [], []>} : vector<2x32xbf16>, vector<32x128xbf16>, vector<2x128xf32> -> vector<2x128xf32>
      %c0_30 = arith.constant 0 : index
      %c0_31 = arith.constant 0 : index
      %36 = vector.load %arg8[%c0_30, %c0_31] : memref<1x128xf32, #tpu.memory_space<vmem>>, vector<1x128xf32>
      %37 = vector.broadcast %36 : vector<1x128xf32> to vector<2x128xf32>
      %38 = arith.addf %35, %37 : vector<2x128xf32>
      %c0_32 = arith.constant 0 : index
      %c0_33 = arith.constant 0 : index
      %39 = vector.load %arg9[%c0_32, %c0_33] : memref<2x128xf32, #tpu.memory_space<vmem>>, vector<2x128xf32>
      tpu.vector_store %arg9[%c0_32, %c0_33], %38 {strides = array<i32>} : memref<2x128xf32, #tpu.memory_space<vmem>>, vector<2x128xf32>,
    } else {
    }
    return
  }
  func.func @transform_0(%arg0: i32, %arg1: i32) -> (i32, i32, i32) {
    %c0_i32 = arith.constant 0 : i32
    %c0_i32_0 = arith.constant 0 : i32
    return %arg0, %arg1, %c0_i32 : i32, i32, i32
  }
  func.func @transform_1(%arg0: i32, %arg1: i32) -> (i32, i32) {
    %c0_i32 = arith.constant 0 : i32
    return %arg0, %arg1 : i32, i32
  }
  func.func @transform_2(%arg0: i32, %arg1: i32) -> (i32, i32) {
    %c0_i32 = arith.constant 0 : i32
    %c0_i32_0 = arith.constant 0 : i32
    return %arg0, %c0_i32 : i32, i32
  }
  func.func @transform_3(%arg0: i32, %arg1: i32) -> (i32, i32) {
    %c0_i32 = arith.constant 0 : i32
    %c0_i32_0 = arith.constant 0 : i32
    %c0_i32_1 = arith.constant 0 : i32
    return %c0_i32, %c0_i32_0 : i32, i32
  }
  func.func @transform_4(%arg0: i32, %arg1: i32) -> (i32, i32) {
    %c0_i32 = arith.constant 0 : i32
    %c0_i32_0 = arith.constant 0 : i32
    %c0_i32_1 = arith.constant 0 : i32
    return %c0_i32, %c0_i32_0 : i32, i32
  }
  func.func @transform_5(%arg0: i32, %arg1: i32) -> (i32, i32) {
    %c0_i32 = arith.constant 0 : i32
    %c0_i32_0 = arith.constant 0 : i32
    %c0_i32_1 = arith.constant 0 : i32
    return %c0_i32, %c0_i32_0 : i32, i32
  }
  func.func @transform_6(%arg0: i32, %arg1: i32) -> (i32, i32) {
    %c0_i32 = arith.constant 0 : i32
    %c0_i32_0 = arith.constant 0 : i32
    %c0_i32_1 = arith.constant 0 : i32
    return %c0_i32, %c0_i32_0 : i32, i32
  }
  func.func @transform_7(%arg0: i32, %arg1: i32) -> (i32, i32) {
    %c0_i32 = arith.constant 0 : i32
    %c0_i32_0 = arith.constant 0 : i32
    return %arg0, %c0_i32 : i32, i32
  }
}

</mosaic_0001>

<llo_original>
// kernel: tpu_custom_call.1
$region0: #{tpu_custom_call.1}
  #allocation0 [shape = 'u32[]', space=smem, size = 0x4, offset = 0x4, fixed_abs, tag = 'smem constant byte address 0x4 - core index']
  #allocation1 [shape = 'u32[144,128]{1,0:T(1,128)}', space=vmem, size = 0x12000, scoped, tag = 'internal scratch']
  #allocation2 [shape = 'f32[2,32]{1,0:T(2,128)}', space=vmem, size = 0x400, scoped, tag = 'scratch operand']
  #allocation3 [shape = 'f32[2,1]{1,0:T(2,128)}', space=vmem, size = 0x400, scoped, tag = 'scratch operand']
  %s0 = inlined_call_operand.hbm [shape: bf16[2,8,32], index: 0, kind: input, shape index: {}]
  %s1 = inlined_call_operand.hbm [shape: bf16[2,8], index: 1, kind: input, shape index: {}]
  %s2 = inlined_call_operand.hbm [shape: bf16[2,16], index: 2, kind: input, shape index: {}]
  %s3 = inlined_call_operand.hbm [shape: bf16[16,32], index: 3, kind: input, shape index: {}]
  %s4 = inlined_call_operand.hbm [shape: f32[1,32], index: 4, kind: input, shape index: {}]
  %s5 = inlined_call_operand.hbm [shape: bf16[32,128], index: 5, kind: input, shape index: {}]
  %s6 = inlined_call_operand.hbm [shape: f32[1,128], index: 6, kind: input, shape index: {}]
  %s7 = inlined_call_operand.hbm [shape: f32[2,128], index: 7, kind: output, shape index: {}]
  %s8 = sld [smem:[#allocation0]]
  $region74: #{tpu_custom_call.1} parent=0
    _
  %s10 = ssub.s32 1, %s8
  %s11 = scalar_select 0, %s10, %s8
  $region1: #{tpu_custom_call.1} parent=0
    #allocation4 [shape = 'u8[4096]{0}', space=vmem, size = 0x1000, scoped, tag = 'input window, operand 0, single buffered']
    #allocation5 [shape = 's32[1]{0}', space=sflag, size = 0x4, scoped, tag = 'scoped memory for tpu_custom_call.1']
    #allocation6 [shape = 's32[1]{0}', space=sflag, size = 0x4, scoped, tag = 'scoped memory for tpu_custom_call.1']
    #allocation7 [shape = 'u8[512]{0}', space=vmem, size = 0x400, scoped, tag = 'input window, operand 1, single buffered']
    #allocation8 [shape = 's32[1]{0}', space=sflag, size = 0x4, scoped, tag = 'scoped memory for tpu_custom_call.1']
    #allocation9 [shape = 'u8[512]{0}', space=vmem, size = 0x400, scoped, tag = 'input window, operand 2, single buffered']
    #allocation10 [shape = 'u8[4096]{0}', space=vmem, size = 0x1000, scoped, tag = 'input window, operand 3, single buffered']
    #allocation11 [shape = 's32[1]{0}', space=sflag, size = 0x4, scoped, tag = 'scoped memory for tpu_custom_call.1']
    #allocation12 [shape = 'u8[512]{0}', space=vmem, size = 0x400, scoped, tag = 'input window, operand 4, single buffered']
    #allocation13 [shape = 'u8[8192]{0}', space=vmem, size = 0x2000, scoped, tag = 'input window, operand 5, single buffered']
    #allocation14 [shape = 's32[1]{0}', space=sflag, size = 0x4, scoped, tag = 'scoped memory for tpu_custom_call.1']
    #allocation15 [shape = 'u8[512]{0}', space=vmem, size = 0x400, scoped, tag = 'input window, operand 6, single buffered']
    #allocation16 [shape = 'u8[1024]{0}', space=vmem, size = 0x400, scoped, tag = 'output window, operand 0, single buffered']
    %12 = vsyncpa [#allocation5], 0
    %13 = vsyncpa [#allocation8], 0
    %14 = vsyncpa [#allocation11], 0
    %15 = vsyncpa [#allocation14], 0
    %16 = vsyncpa [#allocation6], 0
    // Predicated region
    $region2: #{tpu_custom_call.1} parent=1 // pred_check
      _
    $region3: #{tpu_custom_call.1} parent=1 // pred_check_branch
      %18 = sbr.rel (0) target = $region5
    $region4: #{tpu_custom_call.1} parent=1 // pred_region
      %s20 = ssub.s32 128, 128
      %21 = vsyncadd [#allocation5], %s20
      %s22 = sshll.u32 [#allocation4], 4
      %s23 = int_to_ptr.vmem [resolvable:$true] %s22
      %28 = dma.hbm_to_vmem [thread:$0]  %s0, 128, %s23, [#allocation5], 64, 64, 4
    $region5: #{tpu_custom_call.1} parent=1 // pred_fallthru
      _
    // Predicated region
    $region6: #{tpu_custom_call.1} parent=1 // pred_check
      _
    $region7: #{tpu_custom_call.1} parent=1 // pred_check_branch
      %30 = sbr.rel (0) target = $region9
    $region8: #{tpu_custom_call.1} parent=1 // pred_region
      %s32 = ssub.s32 16, 16
      %33 = vsyncadd [#allocation8], %s32
      %s35 = sshll.u32 [#allocation7], 4
      %s36 = int_to_ptr.vmem [resolvable:$true] %s35
      %38 = dma.hbm_to_vmem [thread:$0]  %s1, 16, %s36, [#allocation8]
    $region9: #{tpu_custom_call.1} parent=1 // pred_fallthru
      _
    // Predicated region
    $region10: #{tpu_custom_call.1} parent=1 // pred_check
      _
    $region11: #{tpu_custom_call.1} parent=1 // pred_check_branch
      %40 = sbr.rel (0) target = $region13
    $region12: #{tpu_custom_call.1} parent=1 // pred_region
      %s42 = ssub.s32 16, 16
      %43 = vsyncadd [#allocation8], %s42
      %s45 = sshll.u32 [#allocation9], 4
      %s46 = int_to_ptr.vmem [resolvable:$true] %s45
      %48 = dma.hbm_to_vmem [thread:$0]  %s2, 16, %s46, [#allocation8]
    $region13: #{tpu_custom_call.1} parent=1 // pred_fallthru
      _
    // Predicated region
    $region14: #{tpu_custom_call.1} parent=1 // pred_check
      _
    $region15: #{tpu_custom_call.1} parent=1 // pred_check_branch
      %50 = sbr.rel (0) target = $region17
    $region16: #{tpu_custom_call.1} parent=1 // pred_region
      %s52 = ssub.s32 128, 128
      %53 = vsyncadd [#allocation11], %s52
      %s54 = sshll.u32 [#allocation10], 4
      %s55 = int_to_ptr.vmem [resolvable:$true] %s54
      %60 = dma.hbm_to_vmem [thread:$0]  %s3, 128, %s55, [#allocation11], 64, 64, 4
    $region17: #{tpu_custom_call.1} parent=1 // pred_fallthru
      _
    // Predicated region
    $region18: #{tpu_custom_call.1} parent=1 // pred_check
      _
    $region19: #{tpu_custom_call.1} parent=1 // pred_check_branch
      %62 = sbr.rel (0) target = $region21
    $region20: #{tpu_custom_call.1} parent=1 // pred_region
      %s64 = ssub.s32 16, 16
      %65 = vsyncadd [#allocation11], %s64
      %s67 = sshll.u32 [#allocation12], 4
      %s68 = int_to_ptr.vmem [resolvable:$true] %s67
      %70 = dma.hbm_to_vmem [thread:$0]  %s4, 16, %s68, [#allocation11]
    $region21: #{tpu_custom_call.1} parent=1 // pred_fallthru
      _
    // Predicated region
    $region22: #{tpu_custom_call.1} parent=1 // pred_check
      _
    $region23: #{tpu_custom_call.1} parent=1 // pred_check_branch
      %72 = sbr.rel (0) target = $region25
    $region24: #{tpu_custom_call.1} parent=1 // pred_region
      %s74 = ssub.s32 256, 256
      %75 = vsyncadd [#allocation14], %s74
      %s76 = sshll.u32 [#allocation13], 4
      %s77 = int_to_ptr.vmem [resolvable:$true] %s76
      %82 = dma.hbm_to_vmem [thread:$0]  %s5, 256, %s77, [#allocation14], 64, 64, 4
    $region25: #{tpu_custom_call.1} parent=1 // pred_fallthru
      _
    // Predicated region
    $region26: #{tpu_custom_call.1} parent=1 // pred_check
      _
    $region27: #{tpu_custom_call.1} parent=1 // pred_check_branch
      %84 = sbr.rel (0) target = $region29
    $region28: #{tpu_custom_call.1} parent=1 // pred_region
      %s86 = ssub.s32 16, 16
      %87 = vsyncadd [#allocation14], %s86
      %s89 = sshll.u32 [#allocation15], 4
      %s90 = int_to_ptr.vmem [resolvable:$true] %s89
      %92 = dma.hbm_to_vmem [thread:$0]  %s6, 16, %s90, [#allocation14]
    $region29: #{tpu_custom_call.1} parent=1 // pred_fallthru
      _
    // Predicated region
    $region30: #{tpu_custom_call.1} parent=1 // pred_check
      _
    $region31: #{tpu_custom_call.1} parent=1 // pred_check_branch
      %94 = sbr.rel (0) target = $region33
    $region32: #{tpu_custom_call.1} parent=1 // pred_region
      %95 = dma.done [#allocation5], 128
    $region33: #{tpu_custom_call.1} parent=1 // pred_fallthru
      _
    // Predicated region
    $region34: #{tpu_custom_call.1} parent=1 // pred_check
      _
    $region35: #{tpu_custom_call.1} parent=1 // pred_check_branch
      %97 = sbr.rel (0) target = $region37
    $region36: #{tpu_custom_call.1} parent=1 // pred_region
      %98 = dma.done [#allocation8], 16
    $region37: #{tpu_custom_call.1} parent=1 // pred_fallthru
      _
    // Predicated region
    $region38: #{tpu_custom_call.1} parent=1 // pred_check
      _
    $region39: #{tpu_custom_call.1} parent=1 // pred_check_branch
      %100 = sbr.rel (0) target = $region41
    $region40: #{tpu_custom_call.1} parent=1 // pred_region
      %101 = dma.done [#allocation8], 16
    $region41: #{tpu_custom_call.1} parent=1 // pred_fallthru
      _
    // Predicated region
    $region42: #{tpu_custom_call.1} parent=1 // pred_check
      _
    $region43: #{tpu_custom_call.1} parent=1 // pred_check_branch
      %103 = sbr.rel (0) target = $region45
    $region44: #{tpu_custom_call.1} parent=1 // pred_region
      %104 = dma.done [#allocation11], 128
    $region45: #{tpu_custom_call.1} parent=1 // pred_fallthru
      _
    // Predicated region
    $region46: #{tpu_custom_call.1} parent=1 // pred_check
      _
    $region47: #{tpu_custom_call.1} parent=1 // pred_check_branch
      %106 = sbr.rel (0) target = $region49
    $region48: #{tpu_custom_call.1} parent=1 // pred_region
      %107 = dma.done [#allocation11], 16
    $region49: #{tpu_custom_call.1} parent=1 // pred_fallthru
      _
    // Predicated region
    $region50: #{tpu_custom_call.1} parent=1 // pred_check
      _
    $region51: #{tpu_custom_call.1} parent=1 // pred_check_branch
      %109 = sbr.rel (0) target = $region53
    $region52: #{tpu_custom_call.1} parent=1 // pred_region
      %110 = dma.done [#allocation14], 256
    $region53: #{tpu_custom_call.1} parent=1 // pred_fallthru
      _
    // Predicated region
    $region54: #{tpu_custom_call.1} parent=1 // pred_check
      _
    $region55: #{tpu_custom_call.1} parent=1 // pred_check_branch
      %112 = sbr.rel (0) target = $region57
    $region56: #{tpu_custom_call.1} parent=1 // pred_region
      %113 = dma.done [#allocation14], 16
    $region57: #{tpu_custom_call.1} parent=1 // pred_fallthru
      _
    %p115 = scmp.eq.s32.totalorder 0, 0
    // Predicated region
    $region58: #{tpu_custom_call.1} parent=1 // pred_check
      %p116 = pneg %p115
    $region59: #{tpu_custom_call.1} parent=1 // pred_check_branch
      %118 = sbr.rel (%p116) target = $region61
    $region60: #{tpu_custom_call.1} parent=1 // pred_region
      %vm119 = vcmask 254976
      %120 = vst.msk [vmem:[#allocation2] sm:$0x3] %vm119, 0.0
      %vm121 = vcmask 1024
      %122 = vst.msk [vmem:[#allocation3] sm:$0x3] %vm121, 0.0
    $region61: #{tpu_custom_call.1} parent=1 // pred_fallthru
      _
    %v123 = vld [vmem:[#allocation4] sm:$0xf]
    %v124 = vld [vmem:[#allocation4 + $0x4] sm:$0xf]
    %v125 = vld [vmem:[#allocation7] sm:$0x1]
    %v127 = vpack.i.b16 %v125, %v125
    %v129 = vlaneseq
    %v130 = vshrl.u32 %v129, 7
    %v131 = vsub.s32 0, %v130
    %v132 = vrot.slane %v127, %v131
    %134 = vbcast.lane.c.b16.xlu0 %v132, 256
    %v135 = vpop.permute.xlu0 %134
    %v136 = vshrl.u32 %v125, 16
    %v137 = vpack.i.b16 %v136, %v136
    %v139 = vlaneseq
    %v140 = vshrl.u32 %v139, 7
    %v141 = vsub.s32 0, %v140
    %v142 = vrot.slane %v137, %v141
    %144 = vbcast.lane.c.b16.xlu0 %v142, 256
    %v145 = vpop.permute.xlu0 %144
    %v146 = vmul.bf16 %v123, %v135
    %v147 = vmul.bf16 %v124, %v145
    %v148 = vld [vmem:[#allocation2] sm:$0x3]
    %v149 = vunpack.c.l.bf16 %v146
    %v150 = vunpack.c.l.bf16 %v147
    %vm151 = vcmask 261120
    %v152 = vsel %vm151, %v149, 0.0
    %v153 = vrot.slane %v152, 4
    %v154 = vadd.f32 %v152, %v153
    %v155 = vrot.slane %v154, 2
    %v156 = vadd.f32 %v154, %v155
    %v157 = vrot.slane %v156, 1
    %v158 = vadd.f32 %v156, %v157
    %v159 = vsel %vm151, %v150, 0.0
    %v160 = vrot.slane %v159, 4
    %v161 = vadd.f32 %v159, %v160
    %v162 = vrot.slane %v161, 2
    %v163 = vadd.f32 %v161, %v162
    %v164 = vrot.slane %v163, 1
    %v165 = vadd.f32 %v163, %v164
    %vm168 = vcmask 1041409
    %v169 = vsel %vm168, %v165, %v158
    %v171 = vadd.f32 %v148, %v169
    %vm172 = vcmask 254976
    %173 = vst.msk [vmem:[#allocation2] sm:$0x3] %vm172, %v171
    %v174 = vld [vmem:[#allocation3] sm:$0x3]
    %v175 = vunpack.c.l.bf16 %v125
    %vm176 = vcmask 58368
    %v177 = vsel %vm176, %v175, 0.0
    %178 = vadd.xlane.f32.xlu0 %v177
    %v179 = vpop.xlane.xlu0 %178
    %v180 = vadd.f32 %v174, %v179
    %vm181 = vcmask 1024
    %182 = vst.msk [vmem:[#allocation3] sm:$0x3] %vm181, %v180
    // Predicated region
    $region62: #{tpu_custom_call.1} parent=1 // pred_check
      %p183 = pneg %p115
    $region63: #{tpu_custom_call.1} parent=1 // pred_check_branch
      %185 = sbr.rel (%p183) target = $region65
    $region64: #{tpu_custom_call.1} parent=1 // pred_region
      %v186 = vld [vmem:[#allocation9] sm:$0x1]
      %v187 = vld [vmem:[#allocation10] sm:$0xf]
      %v188 = vld [vmem:[#allocation10 + $0x4] sm:$0xf]
      %v189 = vld [vmem:[#allocation12] sm:$0x1]
      %v191 = vlaneseq
      %v192 = vshrl.u32 %v191, 7
      %v193 = vsub.s32 0, %v192
      %v194 = vrot.slane %v189, %v193
      %v198 = vunpack.c.l.b16 %v187
      %v199 = vunpack.c.l.b16 %v188
      %v200 = vpack.c.b16 %v199, %v198
      %vm202 = vcmask 130048
      %v204 = vsel %vm202, %v186, 0
      %206 = vmatprep.subr.bf16.mxu0 0
      %207 = vmatpush1.bf16.msra.mxu0 %v200
      %208 = vmatprep.subr.bf16.mxu0 0
      %209 = vmatpush1.bf16.msra.mxu0 0
      %210 = vmatprep.subr.bf16.mxu0 0
      %211 = vmatpush1.bf16.msra.mxu0 0
      %212 = vmatprep.subr.bf16.mxu0 0
      %213 = vmatpush1.bf16.msra.mxu0 0
      %214 = vmatprep.subr.bf16.mxu0 0
      %215 = vmatpush1.bf16.msra.mxu0 0
      %216 = vmatprep.subr.bf16.mxu0 0
      %217 = vmatpush1.bf16.msra.mxu0 0
      %218 = vmatprep.subr.bf16.mxu0 0
      %219 = vmatpush1.bf16.msra.mxu0 0
      %220 = vmatprep.subr.bf16.mxu0 0
      %221 = vmatpush1.bf16.msra.mxu0 0
      %222 = vmatprep.subr.bf16.mxu0 0
      %223 = vmatpush1.bf16.msra.mxu0 0
      %224 = vmatprep.subr.bf16.mxu0 0
      %225 = vmatpush1.bf16.msra.mxu0 0
      %226 = vmatprep.subr.bf16.mxu0 0
      %227 = vmatpush1.bf16.msra.mxu0 0
      %228 = vmatprep.subr.bf16.mxu0 0
      %229 = vmatpush1.bf16.msra.mxu0 0
      %230 = vmatprep.subr.bf16.mxu0 0
      %231 = vmatpush1.bf16.msra.mxu0 0
      %232 = vmatprep.subr.bf16.mxu0 0
      %233 = vmatpush1.bf16.msra.mxu0 0
      %234 = vmatprep.subr.bf16.mxu0 0
      %235 = vmatpush1.bf16.msra.mxu0 0
      %236 = vmatprep.subr.bf16.mxu0 0
      %237 = vmatpush1.bf16.msra.mxu0 0
      %238 = vmatprep.mubr.bf16.mxu0 0
      %239 = vmatmul.mubr.bf16.gmra.mrb[0].mxu0 %v204
      %v240 = vpop.f32.mrb[0].mxu0
      %v241 = vadd.f32 %v194, %v240
      %v242 = vpop.f32.mrb[0].mxu0
      %v243 = vpop.f32.mrb[0].mxu0
      %v244 = vpop.f32.mrb[0].mxu0
      %245 = vdwg.mxu0
      %v246 = vld [vmem:[#allocation2] sm:$0x3]
      %v247 = vld [vmem:[#allocation3] sm:$0x3]
      %249 = vset.pattern.permute.xlu0 0
      %250 = vperm.xlu0 %249, %v247
      %v251 = vpop.permute.xlu0 %250
      %v253 = vmul.f32 %v241, %v251
      %v254 = vadd.f32 %v246, %v253
      %v255 = vpack.c.bf16 %v254, %v254
      %v256 = vld [vmem:[#allocation13] sm:$0xf]
      %v257 = vld [vmem:[#allocation13 + $0x4] sm:$0xf]
      %v258 = vld [vmem:[#allocation13 + $0x8] sm:$0xf]
      %v259 = vld [vmem:[#allocation13 + $0xc] sm:$0xf]
      %v260 = vld [vmem:[#allocation15] sm:$0x1]
      %v262 = vlaneseq
      %v263 = vshrl.u32 %v262, 7
      %v264 = vsub.s32 0, %v263
      %v265 = vrot.slane %v260, %v264
      %v271 = vunpack.c.l.b16 %v256
      %v272 = vunpack.c.l.b16 %v257
      %v273 = vunpack.c.l.b16 %v258
      %v274 = vunpack.c.l.b16 %v259
      %v275 = vpack.c.b16 %v272, %v271
      %v276 = vpack.c.b16 %v274, %v273
      %v280 = vsel %vm151, %v255, 0
      %282 = vmatprep.subr.bf16.mxu0 0
      %283 = vmatpush1.bf16.msra.mxu0 %v275
      %284 = vmatprep.subr.bf16.mxu0 0
      %285 = vmatpush1.bf16.msra.mxu0 %v276
      %286 = vmatprep.subr.bf16.mxu0 0
      %287 = vmatpush1.bf16.msra.mxu0 0
      %288 = vmatprep.subr.bf16.mxu0 0
      %289 = vmatpush1.bf16.msra.mxu0 0
      %290 = vmatprep.subr.bf16.mxu0 0
      %291 = vmatpush1.bf16.msra.mxu0 0
      %292 = vmatprep.subr.bf16.mxu0 0
      %293 = vmatpush1.bf16.msra.mxu0 0
      %294 = vmatprep.subr.bf16.mxu0 0
      %295 = vmatpush1.bf16.msra.mxu0 0
      %296 = vmatprep.subr.bf16.mxu0 0
      %297 = vmatpush1.bf16.msra.mxu0 0
      %298 = vmatprep.subr.bf16.mxu0 0
      %299 = vmatpush1.bf16.msra.mxu0 0
      %300 = vmatprep.subr.bf16.mxu0 0
      %301 = vmatpush1.bf16.msra.mxu0 0
      %302 = vmatprep.subr.bf16.mxu0 0
      %303 = vmatpush1.bf16.msra.mxu0 0
      %304 = vmatprep.subr.bf16.mxu0 0
      %305 = vmatpush1.bf16.msra.mxu0 0
      %306 = vmatprep.subr.bf16.mxu0 0
      %307 = vmatpush1.bf16.msra.mxu0 0
      %308 = vmatprep.subr.bf16.mxu0 0
      %309 = vmatpush1.bf16.msra.mxu0 0
      %310 = vmatprep.subr.bf16.mxu0 0
      %311 = vmatpush1.bf16.msra.mxu0 0
      %312 = vmatprep.subr.bf16.mxu0 0
      %313 = vmatpush1.bf16.msra.mxu0 0
      %314 = vmatprep.mubr.bf16.mxu0 0
      %315 = vmatmul.mubr.bf16.gmra.mrb[0].mxu0 %v280
      %v316 = vpop.f32.mrb[0].mxu0
      %v317 = vadd.f32 %v265, %v316
      %v318 = vpop.f32.mrb[0].mxu0
      %v319 = vpop.f32.mrb[0].mxu0
      %v320 = vpop.f32.mrb[0].mxu0
      %321 = vdwg.mxu0
      %322 = vst [vmem:[#allocation16] sm:$0x3] %v317
    $region65: #{tpu_custom_call.1} parent=1 // pred_fallthru
      _
    // Predicated region
    $region66: #{tpu_custom_call.1} parent=1 // pred_check
      _
    $region67: #{tpu_custom_call.1} parent=1 // pred_check_branch
      %324 = sbr.rel (0) target = $region69
    $region68: #{tpu_custom_call.1} parent=1 // pred_region
      %s326 = ssub.s32 32, 32
      %327 = vsyncadd [#allocation6], %s326
      %s329 = sshll.u32 [#allocation16], 4
      %s330 = int_to_ptr.vmem [resolvable:$true] %s329
      %332 = dma.vmem_to_hbm [thread:$0]  %s330, 32, %s7, [#allocation6]
    $region69: #{tpu_custom_call.1} parent=1 // pred_fallthru
      _
    // Predicated region
    $region70: #{tpu_custom_call.1} parent=1 // pred_check
      _
    $region71: #{tpu_custom_call.1} parent=1 // pred_check_branch
      %334 = sbr.rel (0) target = $region73
    $region72: #{tpu_custom_call.1} parent=1 // pred_region
      %335 = dma.done [#allocation6], 32
    $region73: #{tpu_custom_call.1} parent=1 // pred_fallthru
      _
    %336 = vsyncpa [#allocation5], 1
    %337 = vsyncpa [#allocation8], 1
    %338 = vsyncpa [#allocation11], 1
    %339 = vsyncpa [#allocation14], 1
    %340 = vsyncpa [#allocation6], 1

// kernel: tpu_custom_call.1
$region0: #{tpu_custom_call.1}
  #allocation0 [shape = 'u32[]', space=smem, size = 0x4, offset = 0x4, fixed_abs, tag = 'smem constant byte address 0x4 - core index']
  #allocation1 [shape = 'u32[144,128]{1,0:T(1,128)}', space=vmem, size = 0x12000, scoped, tag = 'internal scratch']
  #allocation2 [shape = 'f32[2,32]{1,0:T(2,128)}', space=vmem, size = 0x400, scoped, tag = 'scratch operand']
  #allocation3 [shape = 'f32[2,1]{1,0:T(2,128)}', space=vmem, size = 0x400, scoped, tag = 'scratch operand']
  %s0 = inlined_call_operand.hbm [shape: bf16[2,8,32], index: 0, kind: input, shape index: {}]
  %s1 = inlined_call_operand.hbm [shape: bf16[2,8], index: 1, kind: input, shape index: {}]
  %s2 = inlined_call_operand.hbm [shape: bf16[2,16], index: 2, kind: input, shape index: {}]
  %s3 = inlined_call_operand.hbm [shape: bf16[16,32], index: 3, kind: input, shape index: {}]
  %s4 = inlined_call_operand.hbm [shape: f32[1,32], index: 4, kind: input, shape index: {}]
  %s5 = inlined_call_operand.hbm [shape: bf16[32,128], index: 5, kind: input, shape index: {}]
  %s6 = inlined_call_operand.hbm [shape: f32[1,128], index: 6, kind: input, shape index: {}]
  %s7 = inlined_call_operand.hbm [shape: f32[2,128], index: 7, kind: output, shape index: {}]
  %s8 = sld [smem:[#allocation0]]
  $region74: #{tpu_custom_call.1} parent=0
    _
  %s10 = ssub.s32 1, %s8
  %s11 = scalar_select 0, %s10, %s8
  $region1: #{tpu_custom_call.1} parent=0
    #allocation4 [shape = 'u8[4096]{0}', space=vmem, size = 0x1000, scoped, tag = 'input window, operand 0, single buffered']
    #allocation5 [shape = 's32[1]{0}', space=sflag, size = 0x4, scoped, tag = 'scoped memory for tpu_custom_call.1']
    #allocation6 [shape = 's32[1]{0}', space=sflag, size = 0x4, scoped, tag = 'scoped memory for tpu_custom_call.1']
    #allocation7 [shape = 'u8[512]{0}', space=vmem, size = 0x400, scoped, tag = 'input window, operand 1, single buffered']
    #allocation8 [shape = 's32[1]{0}', space=sflag, size = 0x4, scoped, tag = 'scoped memory for tpu_custom_call.1']
    #allocation9 [shape = 'u8[512]{0}', space=vmem, size = 0x400, scoped, tag = 'input window, operand 2, single buffered']
    #allocation10 [shape = 'u8[4096]{0}', space=vmem, size = 0x1000, scoped, tag = 'input window, operand 3, single buffered']
    #allocation11 [shape = 's32[1]{0}', space=sflag, size = 0x4, scoped, tag = 'scoped memory for tpu_custom_call.1']
    #allocation12 [shape = 'u8[512]{0}', space=vmem, size = 0x400, scoped, tag = 'input window, operand 4, single buffered']
    #allocation13 [shape = 'u8[8192]{0}', space=vmem, size = 0x2000, scoped, tag = 'input window, operand 5, single buffered']
    #allocation14 [shape = 's32[1]{0}', space=sflag, size = 0x4, scoped, tag = 'scoped memory for tpu_custom_call.1']
    #allocation15 [shape = 'u8[512]{0}', space=vmem, size = 0x400, scoped, tag = 'input window, operand 6, single buffered']
    #allocation16 [shape = 'u8[1024]{0}', space=vmem, size = 0x400, scoped, tag = 'output window, operand 0, single buffered']
    %12 = vsyncpa [#allocation5], 0
    %13 = vsyncpa [#allocation8], 0
    %14 = vsyncpa [#allocation11], 0
    %15 = vsyncpa [#allocation14], 0
    %16 = vsyncpa [#allocation6], 0
    // Predicated region
    $region2: #{tpu_custom_call.1} parent=1 // pred_check
      _
    $region3: #{tpu_custom_call.1} parent=1 // pred_check_branch
      %18 = sbr.rel (0) target = $region5
    $region4: #{tpu_custom_call.1} parent=1 // pred_region
      %s20 = ssub.s32 128, 128
      %21 = vsyncadd [#allocation5], %s20
      %s22 = sshll.u32 [#allocation4], 4
      %s23 = int_to_ptr.vmem [resolvable:$true] %s22
      %28 = dma.hbm_to_vmem [thread:$0]  %s0, 128, %s23, [#allocation5], 64, 64, 4
    $region5: #{tpu_custom_call.1} parent=1 // pred_fallthru
      _
    // Predicated region
    $region6: #{tpu_custom_call.1} parent=1 // pred_check
      _
    $region7: #{tpu_custom_call.1} parent=1 // pred_check_branch
      %30 = sbr.rel (0) target = $region9
    $region8: #{tpu_custom_call.1} parent=1 // pred_region
      %s32 = ssub.s32 16, 16
      %33 = vsyncadd [#allocation8], %s32
      %s35 = sshll.u32 [#allocation7], 4
      %s36 = int_to_ptr.vmem [resolvable:$true] %s35
      %38 = dma.hbm_to_vmem [thread:$0]  %s1, 16, %s36, [#allocation8]
    $region9: #{tpu_custom_call.1} parent=1 // pred_fallthru
      _
    // Predicated region
    $region10: #{tpu_custom_call.1} parent=1 // pred_check
      _
    $region11: #{tpu_custom_call.1} parent=1 // pred_check_branch
      %40 = sbr.rel (0) target = $region13
    $region12: #{tpu_custom_call.1} parent=1 // pred_region
      %s42 = ssub.s32 16, 16
      %43 = vsyncadd [#allocation8], %s42
      %s45 = sshll.u32 [#allocation9], 4
      %s46 = int_to_ptr.vmem [resolvable:$true] %s45
      %48 = dma.hbm_to_vmem [thread:$0]  %s2, 16, %s46, [#allocation8]
    $region13: #{tpu_custom_call.1} parent=1 // pred_fallthru
      _
    // Predicated region
    $region14: #{tpu_custom_call.1} parent=1 // pred_check
      _
    $region15: #{tpu_custom_call.1} parent=1 // pred_check_branch
      %50 = sbr.rel (0) target = $region17
    $region16: #{tpu_custom_call.1} parent=1 // pred_region
      %s52 = ssub.s32 128, 128
      %53 = vsyncadd [#allocation11], %s52
      %s54 = sshll.u32 [#allocation10], 4
      %s55 = int_to_ptr.vmem [resolvable:$true] %s54
      %60 = dma.hbm_to_vmem [thread:$0]  %s3, 128, %s55, [#allocation11], 64, 64, 4
    $region17: #{tpu_custom_call.1} parent=1 // pred_fallthru
      _
    // Predicated region
    $region18: #{tpu_custom_call.1} parent=1 // pred_check
      _
    $region19: #{tpu_custom_call.1} parent=1 // pred_check_branch
      %62 = sbr.rel (0) target = $region21
    $region20: #{tpu_custom_call.1} parent=1 // pred_region
      %s64 = ssub.s32 16, 16
      %65 = vsyncadd [#allocation11], %s64
      %s67 = sshll.u32 [#allocation12], 4
      %s68 = int_to_ptr.vmem [resolvable:$true] %s67
      %70 = dma.hbm_to_vmem [thread:$0]  %s4, 16, %s68, [#allocation11]
    $region21: #{tpu_custom_call.1} parent=1 // pred_fallthru
      _
    // Predicated region
    $region22: #{tpu_custom_call.1} parent=1 // pred_check
      _
    $region23: #{tpu_custom_call.1} parent=1 // pred_check_branch
      %72 = sbr.rel (0) target = $region25
    $region24: #{tpu_custom_call.1} parent=1 // pred_region
      %s74 = ssub.s32 256, 256
      %75 = vsyncadd [#allocation14], %s74
      %s76 = sshll.u32 [#allocation13], 4
      %s77 = int_to_ptr.vmem [resolvable:$true] %s76
      %82 = dma.hbm_to_vmem [thread:$0]  %s5, 256, %s77, [#allocation14], 64, 64, 4
    $region25: #{tpu_custom_call.1} parent=1 // pred_fallthru
      _
    // Predicated region
    $region26: #{tpu_custom_call.1} parent=1 // pred_check
      _
    $region27: #{tpu_custom_call.1} parent=1 // pred_check_branch
      %84 = sbr.rel (0) target = $region29
    $region28: #{tpu_custom_call.1} parent=1 // pred_region
      %s86 = ssub.s32 16, 16
      %87 = vsyncadd [#allocation14], %s86
      %s89 = sshll.u32 [#allocation15], 4
      %s90 = int_to_ptr.vmem [resolvable:$true] %s89
      %92 = dma.hbm_to_vmem [thread:$0]  %s6, 16, %s90, [#allocation14]
    $region29: #{tpu_custom_call.1} parent=1 // pred_fallthru
      _
    // Predicated region
    $region30: #{tpu_custom_call.1} parent=1 // pred_check
      _
    $region31: #{tpu_custom_call.1} parent=1 // pred_check_branch
      %94 = sbr.rel (0) target = $region33
    $region32: #{tpu_custom_call.1} parent=1 // pred_region
      %95 = dma.done [#allocation5], 128
    $region33: #{tpu_custom_call.1} parent=1 // pred_fallthru
      _
    // Predicated region
    $region34: #{tpu_custom_call.1} parent=1 // pred_check
      _
    $region35: #{tpu_custom_call.1} parent=1 // pred_check_branch
      %97 = sbr.rel (0) target = $region37
    $region36: #{tpu_custom_call.1} parent=1 // pred_region
      %98 = dma.done [#allocation8], 16
    $region37: #{tpu_custom_call.1} parent=1 // pred_fallthru
      _
    // Predicated region
    $region38: #{tpu_custom_call.1} parent=1 // pred_check
      _
    $region39: #{tpu_custom_call.1} parent=1 // pred_check_branch
      %100 = sbr.rel (0) target = $region41
    $region40: #{tpu_custom_call.1} parent=1 // pred_region
      %101 = dma.done [#allocation8], 16
    $region41: #{tpu_custom_call.1} parent=1 // pred_fallthru
      _
    // Predicated region
    $region42: #{tpu_custom_call.1} parent=1 // pred_check
      _
    $region43: #{tpu_custom_call.1} parent=1 // pred_check_branch
      %103 = sbr.rel (0) target = $region45
    $region44: #{tpu_custom_call.1} parent=1 // pred_region
      %104 = dma.done [#allocation11], 128
    $region45: #{tpu_custom_call.1} parent=1 // pred_fallthru
      _
    // Predicated region
    $region46: #{tpu_custom_call.1} parent=1 // pred_check
      _
    $region47: #{tpu_custom_call.1} parent=1 // pred_check_branch
      %106 = sbr.rel (0) target = $region49
    $region48: #{tpu_custom_call.1} parent=1 // pred_region
      %107 = dma.done [#allocation11], 16
    $region49: #{tpu_custom_call.1} parent=1 // pred_fallthru
      _
    // Predicated region
    $region50: #{tpu_custom_call.1} parent=1 // pred_check
      _
    $region51: #{tpu_custom_call.1} parent=1 // pred_check_branch
      %109 = sbr.rel (0) target = $region53
    $region52: #{tpu_custom_call.1} parent=1 // pred_region
      %110 = dma.done [#allocation14], 256
    $region53: #{tpu_custom_call.1} parent=1 // pred_fallthru
      _
    // Predicated region
    $region54: #{tpu_custom_call.1} parent=1 // pred_check
      _
    $region55: #{tpu_custom_call.1} parent=1 // pred_check_branch
      %112 = sbr.rel (0) target = $region57
    $region56: #{tpu_custom_call.1} parent=1 // pred_region
      %113 = dma.done [#allocation14], 16
    $region57: #{tpu_custom_call.1} parent=1 // pred_fallthru
      _
    %p115 = scmp.eq.s32.totalorder 0, 0
    // Predicated region
    $region58: #{tpu_custom_call.1} parent=1 // pred_check
      %p116 = pneg %p115
    $region59: #{tpu_custom_call.1} parent=1 // pred_check_branch
      %118 = sbr.rel (%p116) target = $region61
    $region60: #{tpu_custom_call.1} parent=1 // pred_region
      %vm119 = vcmask 254976
      %120 = vst.msk [vmem:[#allocation2] sm:$0x3] %vm119, 0.0
      %vm121 = vcmask 1024
      %122 = vst.msk [vmem:[#allocation3] sm:$0x3] %vm121, 0.0
    $region61: #{tpu_custom_call.1} parent=1 // pred_fallthru
      _
    %v123 = vld [vmem:[#allocation4] sm:$0xf]
    %v124 = vld [vmem:[#allocation4 + $0x4] sm:$0xf]
    %v125 = vld [vmem:[#allocation7] sm:$0x1]
    %v127 = vpack.i.b16 %v125, %v125
    %v129 = vlaneseq
    %v130 = vshrl.u32 %v129, 7
    %v131 = vsub.s32 0, %v130
    %v132 = vrot.slane %v127, %v131
    %134 = vbcast.lane.c.b16.xlu0 %v132, 256
    %v135 = vpop.permute.xlu0 %134
    %v136 = vshrl.u32 %v125, 16
    %v137 = vpack.i.b16 %v136, %v136
    %v139 = vlaneseq
    %v140 = vshrl.u32 %v139, 7
    %v141 = vsub.s32 0, %v140
    %v142 = vrot.slane %v137, %v141
    %144 = vbcast.lane.c.b16.xlu0 %v142, 256
    %v145 = vpop.permute.xlu0 %144
    %v146 = vmul.bf16 %v123, %v135
    %v147 = vmul.bf16 %v124, %v145
    %v148 = vld [vmem:[#allocation2] sm:$0x3]
    %v149 = vunpack.c.l.bf16 %v146
    %v150 = vunpack.c.l.bf16 %v147
    %vm151 = vcmask 261120
    %v152 = vsel %vm151, %v149, 0.0
    %v153 = vrot.slane %v152, 4
    %v154 = vadd.f32 %v152, %v153
    %v155 = vrot.slane %v154, 2
    %v156 = vadd.f32 %v154, %v155
    %v157 = vrot.slane %v156, 1
    %v158 = vadd.f32 %v156, %v157
    %v159 = vsel %vm151, %v150, 0.0
    %v160 = vrot.slane %v159, 4
    %v161 = vadd.f32 %v159, %v160
    %v162 = vrot.slane %v161, 2
    %v163 = vadd.f32 %v161, %v162
    %v164 = vrot.slane %v163, 1
    %v165 = vadd.f32 %v163, %v164
    %vm168 = vcmask 1041409
    %v169 = vsel %vm168, %v165, %v158
    %v171 = vadd.f32 %v148, %v169
    %vm172 = vcmask 254976
    %173 = vst.msk [vmem:[#allocation2] sm:$0x3] %vm172, %v171
    %v174 = vld [vmem:[#allocation3] sm:$0x3]
    %v175 = vunpack.c.l.bf16 %v125
    %vm176 = vcmask 58368
    %v177 = vsel %vm176, %v175, 0.0
    %178 = vadd.xlane.f32.xlu0 %v177
    %v179 = vpop.xlane.xlu0 %178
    %v180 = vadd.f32 %v174, %v179
    %vm181 = vcmask 1024
    %182 = vst.msk [vmem:[#allocation3] sm:$0x3] %vm181, %v180
    // Predicated region
    $region62: #{tpu_custom_call.1} parent=1 // pred_check
      %p183 = pneg %p115
    $region63: #{tpu_custom_call.1} parent=1 // pred_check_branch
      %185 = sbr.rel (%p183) target = $region65
    $region64: #{tpu_custom_call.1} parent=1 // pred_region
      %v186 = vld [vmem:[#allocation9] sm:$0x1]
      %v187 = vld [vmem:[#allocation10] sm:$0xf]
      %v188 = vld [vmem:[#allocation10 + $0x4] sm:$0xf]
      %v189 = vld [vmem:[#allocation12] sm:$0x1]
      %v191 = vlaneseq
      %v192 = vshrl.u32 %v191, 7
      %v193 = vsub.s32 0, %v192
      %v194 = vrot.slane %v189, %v193
      %v198 = vunpack.c.l.b16 %v187
      %v199 = vunpack.c.l.b16 %v188
      %v200 = vpack.c.b16 %v199, %v198
      %vm202 = vcmask 130048
      %v204 = vsel %vm202, %v186, 0
      %206 = vmatprep.subr.bf16.mxu0 0
      %207 = vmatpush1.bf16.msra.mxu0 %v200
      %208 = vmatprep.subr.bf16.mxu0 0
      %209 = vmatpush1.bf16.msra.mxu0 0
      %210 = vmatprep.subr.bf16.mxu0 0
      %211 = vmatpush1.bf16.msra.mxu0 0
      %212 = vmatprep.subr.bf16.mxu0 0
      %213 = vmatpush1.bf16.msra.mxu0 0
      %214 = vmatprep.subr.bf16.mxu0 0
      %215 = vmatpush1.bf16.msra.mxu0 0
      %216 = vmatprep.subr.bf16.mxu0 0
      %217 = vmatpush1.bf16.msra.mxu0 0
      %218 = vmatprep.subr.bf16.mxu0 0
      %219 = vmatpush1.bf16.msra.mxu0 0
      %220 = vmatprep.subr.bf16.mxu0 0
      %221 = vmatpush1.bf16.msra.mxu0 0
      %222 = vmatprep.subr.bf16.mxu0 0
      %223 = vmatpush1.bf16.msra.mxu0 0
      %224 = vmatprep.subr.bf16.mxu0 0
      %225 = vmatpush1.bf16.msra.mxu0 0
      %226 = vmatprep.subr.bf16.mxu0 0
      %227 = vmatpush1.bf16.msra.mxu0 0
      %228 = vmatprep.subr.bf16.mxu0 0
      %229 = vmatpush1.bf16.msra.mxu0 0
      %230 = vmatprep.subr.bf16.mxu0 0
      %231 = vmatpush1.bf16.msra.mxu0 0
      %232 = vmatprep.subr.bf16.mxu0 0
      %233 = vmatpush1.bf16.msra.mxu0 0
      %234 = vmatprep.subr.bf16.mxu0 0
      %235 = vmatpush1.bf16.msra.mxu0 0
      %236 = vmatprep.subr.bf16.mxu0 0
      %237 = vmatpush1.bf16.msra.mxu0 0
      %238 = vmatprep.mubr.bf16.mxu0 0
      %239 = vmatmul.mubr.bf16.gmra.mrb[0].mxu0 %v204
      %v240 = vpop.f32.mrb[0].mxu0
      %v241 = vadd.f32 %v194, %v240
      %v242 = vpop.f32.mrb[0].mxu0
      %v243 = vpop.f32.mrb[0].mxu0
      %v244 = vpop.f32.mrb[0].mxu0
      %245 = vdwg.mxu0
      %v246 = vld [vmem:[#allocation2] sm:$0x3]
      %v247 = vld [vmem:[#allocation3] sm:$0x3]
      %249 = vset.pattern.permute.xlu0 0
      %250 = vperm.xlu0 %249, %v247
      %v251 = vpop.permute.xlu0 %250
      %v253 = vmul.f32 %v241, %v251
      %v254 = vadd.f32 %v246, %v253
      %v255 = vpack.c.bf16 %v254, %v254
      %v256 = vld [vmem:[#allocation13] sm:$0xf]
      %v257 = vld [vmem:[#allocation13 + $0x4] sm:$0xf]
      %v258 = vld [vmem:[#allocation13 + $0x8] sm:$0xf]
      %v259 = vld [vmem:[#allocation13 + $0xc] sm:$0xf]
      %v260 = vld [vmem:[#allocation15] sm:$0x1]
      %v262 = vlaneseq
      %v263 = vshrl.u32 %v262, 7
      %v264 = vsub.s32 0, %v263
      %v265 = vrot.slane %v260, %v264
      %v271 = vunpack.c.l.b16 %v256
      %v272 = vunpack.c.l.b16 %v257
      %v273 = vunpack.c.l.b16 %v258
      %v274 = vunpack.c.l.b16 %v259
      %v275 = vpack.c.b16 %v272, %v271
      %v276 = vpack.c.b16 %v274, %v273
      %v280 = vsel %vm151, %v255, 0
      %282 = vmatprep.subr.bf16.mxu0 0
      %283 = vmatpush1.bf16.msra.mxu0 %v275
      %284 = vmatprep.subr.bf16.mxu0 0
      %285 = vmatpush1.bf16.msra.mxu0 %v276
      %286 = vmatprep.subr.bf16.mxu0 0
      %287 = vmatpush1.bf16.msra.mxu0 0
      %288 = vmatprep.subr.bf16.mxu0 0
      %289 = vmatpush1.bf16.msra.mxu0 0
      %290 = vmatprep.subr.bf16.mxu0 0
      %291 = vmatpush1.bf16.msra.mxu0 0
      %292 = vmatprep.subr.bf16.mxu0 0
      %293 = vmatpush1.bf16.msra.mxu0 0
      %294 = vmatprep.subr.bf16.mxu0 0
      %295 = vmatpush1.bf16.msra.mxu0 0
      %296 = vmatprep.subr.bf16.mxu0 0
      %297 = vmatpush1.bf16.msra.mxu0 0
      %298 = vmatprep.subr.bf16.mxu0 0
      %299 = vmatpush1.bf16.msra.mxu0 0
      %300 = vmatprep.subr.bf16.mxu0 0
      %301 = vmatpush1.bf16.msra.mxu0 0
      %302 = vmatprep.subr.bf16.mxu0 0
      %303 = vmatpush1.bf16.msra.mxu0 0
      %304 = vmatprep.subr.bf16.mxu0 0
      %305 = vmatpush1.bf16.msra.mxu0 0
      %306 = vmatprep.subr.bf16.mxu0 0
      %307 = vmatpush1.bf16.msra.mxu0 0
      %308 = vmatprep.subr.bf16.mxu0 0
      %309 = vmatpush1.bf16.msra.mxu0 0
      %310 = vmatprep.subr.bf16.mxu0 0
      %311 = vmatpush1.bf16.msra.mxu0 0
      %312 = vmatprep.subr.bf16.mxu0 0
      %313 = vmatpush1.bf16.msra.mxu0 0
      %314 = vmatprep.mubr.bf16.mxu0 0
      %315 = vmatmul.mubr.bf16.gmra.mrb[0].mxu0 %v280
      %v316 = vpop.f32.mrb[0].mxu0
      %v317 = vadd.f32 %v265, %v316
      %v318 = vpop.f32.mrb[0].mxu0
      %v319 = vpop.f32.mrb[0].mxu0
      %v320 = vpop.f32.mrb[0].mxu0
      %321 = vdwg.mxu0
      %322 = vst [vmem:[#allocation16] sm:$0x3] %v317
    $region65: #{tpu_custom_call.1} parent=1 // pred_fallthru
      _
    // Predicated region
    $region66: #{tpu_custom_call.1} parent=1 // pred_check
      _
    $region67: #{tpu_custom_call.1} parent=1 // pred_check_branch
      %324 = sbr.rel (0) target = $region69
    $region68: #{tpu_custom_call.1} parent=1 // pred_region
      %s326 = ssub.s32 32, 32
      %327 = vsyncadd [#allocation6], %s326
      %s329 = sshll.u32 [#allocation16], 4
      %s330 = int_to_ptr.vmem [resolvable:$true] %s329
      %332 = dma.vmem_to_hbm [thread:$0]  %s330, 32, %s7, [#allocation6]
    $region69: #{tpu_custom_call.1} parent=1 // pred_fallthru
      _
    // Predicated region
    $region70: #{tpu_custom_call.1} parent=1 // pred_check
      _
    $region71: #{tpu_custom_call.1} parent=1 // pred_check_branch
      %334 = sbr.rel (0) target = $region73
    $region72: #{tpu_custom_call.1} parent=1 // pred_region
      %335 = dma.done [#allocation6], 32
    $region73: #{tpu_custom_call.1} parent=1 // pred_fallthru
      _
    %336 = vsyncpa [#allocation5], 1
    %337 = vsyncpa [#allocation8], 1
    %338 = vsyncpa [#allocation11], 1
    %339 = vsyncpa [#allocation14], 1
    %340 = vsyncpa [#allocation6], 1

</llo_original>
